<compile_context>
chip_gen: v5e
topology: v5e:2x2
jax: 0.10.0
libtpu: 0.0.40
codegen_flags: <defaults>
</compile_context>

<pallas_src>
import functools

import jax
import jax.numpy as jnp
from jax.experimental import pallas as pl
from jax.experimental.pallas import tpu as pltpu

SUBLANES = 8
TARGET_BLOCK_BYTES = 2 << 20  # ~2 MiB f32 block amortizes per-grid-step overhead


def _choose_layout(total):
    """Flatten to (rows, lanes) with a lane-dense last dim."""
    for lanes in (1024, 512, 256, 128):
        if total % lanes == 0 and (total // lanes) % SUBLANES == 0:
            return total // lanes, lanes
    # TODO(synk): add a masking/padding path for sizes not divisible by 8*128.
    raise ValueError(f"total size {total} must be divisible by 8*128")


def _choose_tile_rows(rows, lanes, itemsize):
    """Largest row-tile that divides `rows`, fits the byte target, prefers %32."""
    row_bytes = lanes * itemsize
    max_rows = max(SUBLANES, int(TARGET_BLOCK_BYTES // row_bytes))
    if rows <= max_rows:
        return rows
    best = None
    for t in range(min(rows, max_rows), SUBLANES - 1, -1):
        if rows % t == 0 and t % SUBLANES == 0:
            if t % 32 == 0:  # int8 native tile is (32, 128): unmasked packed stores
                return t
            if best is None:
                best = t
    return best if best is not None else rows


def _quant_dtype(bits):
    if bits <= 8:
        return jnp.int8
    if bits <= 16:
        return jnp.int16
    return jnp.int32


# ----------------------------- Pass 1: partial min / max --------------------
def _minmax_kernel(x_ref, min_ref, max_ref):
    """Elementwise (8, lanes) running min/max; output refs act as accumulators."""
    i = pl.program_id(1)

    @pl.when(i == 0)
    def _():
        min_ref[...] = jnp.full(min_ref.shape, jnp.inf, min_ref.dtype)
        max_ref[...] = jnp.full(max_ref.shape, -jnp.inf, max_ref.dtype)

    x = x_ref[...].astype(jnp.float32)
    if x.shape[0] == min_ref.shape[0]:
        tile_min = x
        tile_max = x
    else:
        # (tile_rows, lanes) -> (tile_rows//8, 8, lanes); reducing the leading
        # axis is pure per-vreg elementwise VPU work (no XLU per step).
        xr = x.reshape(-1, min_ref.shape[0], min_ref.shape[1])
        tile_min = jnp.min(xr, axis=0)
        tile_max = jnp.max(xr, axis=0)
    min_ref[...] = jnp.minimum(min_ref[...], tile_min)
    max_ref[...] = jnp.maximum(max_ref[...], tile_max)


# ----------------------------- Pass 2: quantize ------------------------------
def _quant_kernel(bits, min_ref, inv_step_ref, x_ref, q_ref):
    mn = min_ref[0]            # SMEM scalar
    inv_step = inv_step_ref[0]  # SMEM scalar (precomputed 1/step, 0 if step==0)
    x = x_ref[...].astype(jnp.float32)
    q = jnp.round((x - mn) * inv_step) - 2.0 ** (bits - 1)
    q = jnp.clip(q, -(2.0 ** (bits - 1)), 2.0 ** (bits - 1) - 1.0)
    q_ref[...] = q.astype(q_ref.dtype)


@functools.partial(jax.jit, static_argnames=("bits",))
def qsend_forward(x, bits):
    """Returns (identity_output, quantized, min, step)."""
    orig_shape = x.shape
    total = x.size
    rows, lanes = _choose_layout(total)
    x2d = x.reshape(rows, lanes)
    tile_rows = _choose_tile_rows(rows, lanes, 4)
    n_tiles = rows // tile_rows
    n_par = 2 if (n_tiles >= 2 and n_tiles % 2 == 0) else 1
    tiles_per_par = n_tiles // n_par

    # Pass 1: per-slice elementwise min/max accumulators. Leading "parallel"
    # axis lets v7x's two TensorCores each scan half of the tiles.
    part_min, part_max = pl.pallas_call(
        _minmax_kernel,
        out_shape=(
            jax.ShapeDtypeStruct((SUBLANES, n_par * lanes), jnp.float32),
            jax.ShapeDtypeStruct((SUBLANES, n_par * lanes), jnp.float32),
        ),
        grid_spec=pltpu.PrefetchScalarGridSpec(
            num_scalar_prefetch=0,
            grid=(n_par, tiles_per_par),
            in_specs=[pl.BlockSpec(
                (tile_rows, lanes),
                lambda c, i: (c * tiles_per_par + i, 0))],
            out_specs=(
                pl.BlockSpec((SUBLANES, lanes), lambda c, i: (0, c)),
                pl.BlockSpec((SUBLANES, lanes), lambda c, i: (0, c)),
            ),
        ),
        compiler_params=pltpu.CompilerParams(
            dimension_semantics=("parallel", "arbitrary")),
    )(x2d)

    # Tiny scalar epilogue: single cross-lane reduce + step / 1/step (guarded).
    mn = jnp.min(part_min)
    mx = jnp.max(part_max)
    step = (mx - mn) / jnp.float32(2.0 ** bits - 1.0)
    safe_step = jnp.where(step > 0, step, jnp.float32(1.0))
    inv_step = jnp.where(step > 0, 1.0 / safe_step, jnp.float32(0.0))

    # Pass 2: elementwise quantization. The identity output is not re-copied;
    # the original x is returned as-is from this wrapper.
    qdtype = _quant_dtype(bits)
    q2d = pl.pallas_call(
        functools.partial(_quant_kernel, bits),
        out_shape=jax.ShapeDtypeStruct((rows, lanes), qdtype),
        grid_spec=pltpu.PrefetchScalarGridSpec(
            num_scalar_prefetch=0,
            grid=(n_tiles,),
            in_specs=[
                pl.BlockSpec(memory_space=pltpu.MemorySpace.SMEM),
                pl.BlockSpec(memory_space=pltpu.MemorySpace.SMEM),
                pl.BlockSpec((tile_rows, lanes), lambda i: (i, 0)),
            ],
            out_specs=pl.BlockSpec((tile_rows, lanes), lambda i: (i, 0)),
        ),
        compiler_params=pltpu.CompilerParams(
            dimension_semantics=("parallel",)),
    )(mn.reshape(1), inv_step.reshape(1), x2d)

    return x, q2d.reshape(orig_shape), mn, step


class QSendLayerGPU:
    """JAX/Pallas port of the PyTorch QSendLayerGPU module (forward only)."""

    def __init__(self, bits, send_rank, rank, pg_group=None, sparse=False):
        self.bits = bits
        self.send_rank = send_rank
        self.rank = rank
        self.sparse = sparse
        self.pg_group = pg_group
        self._sent_payload = None

    def __call__(self, x):
        y, q, mn, step = qsend_forward(x, self.bits)
        # TODO(synk): QtensorSend (NCCL point-to-point send of q/min/step) has
        # no single-device Pallas equivalent; the payload is kept instead.
        self._sent_payload = (q, mn, step)
        return y  # forward returns the input unchanged, as in PyTorch


if __name__ == "__main__":
    BITS = 8

    def check(x, bits):
        layer = QSendLayerGPU(bits=bits, send_rank=1, rank=0)
        y = jax.block_until_ready(layer(x))
        q, mn, step = jax.block_until_ready(layer._sent_payload)

        assert y.shape == x.shape and y.dtype == x.dtype
        assert bool(jnp.allclose(y, x))

        mn_ref = jnp.min(x)
        mx_ref = jnp.max(x)
        step_ref = (mx_ref - mn_ref) / (2.0 ** bits - 1.0)
        assert bool(jnp.allclose(mn, mn_ref, rtol=1e-6, atol=1e-6))
        assert bool(jnp.allclose(step, step_ref, rtol=1e-6, atol=1e-6))

        if bool(step_ref > 0):
            q_ref = jnp.round((x - mn_ref) / step_ref) - 2.0 ** (bits - 1)
            diff = jnp.abs(q.astype(jnp.int32) - q_ref.astype(jnp.int32))
            # allow off-by-one from (x-mn)*1/step vs (x-mn)/step f32 rounding
            assert int(jnp.max(diff)) <= 1
        else:
            # constant input: step==0 must not NaN; all codes collapse to the
            # minimum level.
            assert int(jnp.max(jnp.abs(q.astype(jnp.int32) + 2 ** (bits - 1)))) == 0

    key = jax.random.PRNGKey(0)

    # Primary: small NCHW activation, like the PyTorch module sends.
    x_small = jax.random.normal(key, (2, 4, 16, 16), dtype=jnp.float32)
    check(x_small, BITS)

    # Larger case: exercises the multi-tile grid and the 2-way parallel
    # (megacore-friendly) min/max reduction path.
    x_big = jax.random.normal(jax.random.PRNGKey(1), (8, 32, 64, 64),
                              dtype=jnp.float32)
    check(x_big, BITS)

    # Constant input: step == 0 guard path.
    x_const = jnp.full((2, 4, 16, 16), 3.25, dtype=jnp.float32)
    check(x_const, BITS)

    print("KERNEL_OK")
</pallas_src>

<mosaic_0001>
module attributes {stable_mosaic.version = 11 : i64} {
  func.func @_minmax_kernel(%arg0: i32, %arg1: i32, %arg2: memref<8x256xf32, #tpu.memory_space<vmem>>, %arg3: memref<8x256xf32, #tpu.memory_space<vmem>>, %arg4: memref<8x256xf32, #tpu.memory_space<vmem>>) attributes {dimension_semantics = [#tpu.dimension_semantics<parallel>, #tpu.dimension_semantics<arbitrary>], iteration_bounds = array<i64: 1, 1>, scalar_prefetch = 0 : i64, scratch_operands = 0 : i64, tpu.core_type = #tpu.core_type<tc>, window_params = [{transform_indices = @transform_0, window_bounds = array<i64: 8, 256>}, {transform_indices = @transform_1, window_bounds = array<i64: 8, 256>}, {transform_indices = @transform_2, window_bounds = array<i64: 8, 256>}]} {
    %c0_i32 = arith.constant 0 : i32
    %0 = arith.cmpi eq, %arg1, %c0_i32 : i32
    %1 = arith.extui %0 : i1 to i32
    %c0_i32_0 = arith.constant 0 : i32
    %2 = arith.cmpi ne, %1, %c0_i32_0 : i32
    scf.if %2 {
      %cst = arith.constant 0x7F800000 : f32
      %10 = vector.broadcast %cst : f32 to vector<8x256xf32>
      %c0_10 = arith.constant 0 : index
      %c0_11 = arith.constant 0 : index
      %11 = vector.load %arg3[%c0_10, %c0_11] : memref<8x256xf32, #tpu.memory_space<vmem>>, vector<8x256xf32>
      tpu.vector_store %arg3[%c0_10, %c0_11], %10 {strides = array<i32>} : memref<8x256xf32, #tpu.memory_space<vmem>>, vector<8x256xf32>,
      %cst_12 = arith.constant 0xFF800000 : f32
      %12 = vector.broadcast %cst_12 : f32 to vector<8x256xf32>
      %c0_13 = arith.constant 0 : index
      %c0_14 = arith.constant 0 : index
      %13 = vector.load %arg4[%c0_13, %c0_14] : memref<8x256xf32, #tpu.memory_space<vmem>>, vector<8x256xf32>
      tpu.vector_store %arg4[%c0_13, %c0_14], %12 {strides = array<i32>} : memref<8x256xf32, #tpu.memory_space<vmem>>, vector<8x256xf32>,
    } else {
    }
    %c0 = arith.constant 0 : index
    %c0_1 = arith.constant 0 : index
    %3 = vector.load %arg2[%c0, %c0_1] : memref<8x256xf32, #tpu.memory_space<vmem>>, vector<8x256xf32>
    %c0_2 = arith.constant 0 : index
    %c0_3 = arith.constant 0 : index
    %4 = vector.load %arg3[%c0_2, %c0_3] : memref<8x256xf32, #tpu.memory_space<vmem>>, vector<8x256xf32>
    %5 = arith.minimumf %4, %3 : vector<8x256xf32>
    %c0_4 = arith.constant 0 : index
    %c0_5 = arith.constant 0 : index
    %6 = vector.load %arg3[%c0_4, %c0_5] : memref<8x256xf32, #tpu.memory_space<vmem>>, vector<8x256xf32>
    tpu.vector_store %arg3[%c0_4, %c0_5], %5 {strides = array<i32>} : memref<8x256xf32, #tpu.memory_space<vmem>>, vector<8x256xf32>,
    %c0_6 = arith.constant 0 : index
    %c0_7 = arith.constant 0 : index
    %7 = vector.load %arg4[%c0_6, %c0_7] : memref<8x256xf32, #tpu.memory_space<vmem>>, vector<8x256xf32>
    %8 = arith.maximumf %7, %3 : vector<8x256xf32>
    %c0_8 = arith.constant 0 : index
    %c0_9 = arith.constant 0 : index
    %9 = vector.load %arg4[%c0_8, %c0_9] : memref<8x256xf32, #tpu.memory_space<vmem>>, vector<8x256xf32>
    tpu.vector_store %arg4[%c0_8, %c0_9], %8 {strides = array<i32>} : memref<8x256xf32, #tpu.memory_space<vmem>>, vector<8x256xf32>,
    return
  }
  func.func @transform_0(%arg0: i32, %arg1: i32) -> (i32, i32) {
    %c1_i32 = arith.constant 1 : i32
    %0 = arith.muli %arg0, %c1_i32 : i32
    %1 = arith.addi %0, %arg1 : i32
    %c0_i32 = arith.constant 0 : i32
    %c0_i32_0 = arith.constant 0 : i32
    return %1, %c0_i32 : i32, i32
  }
  func.func @transform_1(%arg0: i32, %arg1: i32) -> (i32, i32) {
    %c0_i32 = arith.constant 0 : i32
    %c0_i32_0 = arith.constant 0 : i32
    return %c0_i32, %arg0 : i32, i32
  }
  func.func @transform_2(%arg0: i32, %arg1: i32) -> (i32, i32) {
    %c0_i32 = arith.constant 0 : i32
    %c0_i32_0 = arith.constant 0 : i32
    return %c0_i32, %arg0 : i32, i32
  }
}

module attributes {stable_mosaic.version = 11 : i64} {
  func.func @_quant_kernel(%arg0: i32, %arg1: memref<1xf32, #tpu.memory_space<smem>>, %arg2: memref<1xf32, #tpu.memory_space<smem>>, %arg3: memref<8x256xf32, #tpu.memory_space<vmem>>, %arg4: memref<8x256xi8, #tpu.memory_space<vmem>>) attributes {dimension_semantics = [#tpu.dimension_semantics<parallel>], iteration_bounds = array<i64: 1>, scalar_prefetch = 0 : i64, scratch_operands = 0 : i64, tpu.core_type = #tpu.core_type<tc>, window_params = [{transform_indices = @transform_0, window_bounds = array<i64: 1>}, {transform_indices = @transform_1, window_bounds = array<i64: 1>}, {transform_indices = @transform_2, window_bounds = array<i64: 8, 256>}, {transform_indices = @transform_3, window_bounds = array<i64: 8, 256>}]} {
    %c0 = arith.constant 0 : index
    %0 = memref.load %arg1[%c0] : memref<1xf32, #tpu.memory_space<smem>>
    %c0_0 = arith.constant 0 : index
    %1 = memref.load %arg2[%c0_0] : memref<1xf32, #tpu.memory_space<smem>>
    %c0_1 = arith.constant 0 : index
    %c0_2 = arith.constant 0 : index
    %2 = vector.load %arg3[%c0_1, %c0_2] : memref<8x256xf32, #tpu.memory_space<vmem>>, vector<8x256xf32>
    %3 = vector.broadcast %0 : f32 to vector<8x256xf32>
    %4 = arith.subf %2, %3 : vector<8x256xf32>
    %5 = vector.broadcast %1 : f32 to vector<8x256xf32>
    %6 = arith.mulf %4, %5 : vector<8x256xf32>
    %7 = math.roundeven %6 : vector<8x256xf32>
    %cst = arith.constant 1.280000e+02 : f32
    %8 = vector.broadcast %cst : f32 to vector<8x256xf32>
    %9 = arith.subf %7, %8 : vector<8x256xf32>
    %cst_3 = arith.constant -1.280000e+02 : f32
    %cst_4 = arith.constant 1.270000e+02 : f32
    %10 = vector.broadcast %cst_3 : f32 to vector<8x256xf32>
    %11 = arith.maximumf %10, %9 : vector<8x256xf32>
    %12 = vector.broadcast %cst_4 : f32 to vector<8x256xf32>
    %13 = arith.minimumf %12, %11 : vector<8x256xf32>
    %14 = arith.fptosi %13 : vector<8x256xf32> to vector<8x256xi8>
    %c0_5 = arith.constant 0 : index
    %c0_6 = arith.constant 0 : index
    %15 = vector.load %arg4[%c0_5, %c0_6] : memref<8x256xi8, #tpu.memory_space<vmem>>, vector<8x256xi8>
    tpu.vector_store %arg4[%c0_5, %c0_6], %14 {strides = array<i32>} : memref<8x256xi8, #tpu.memory_space<vmem>>, vector<8x256xi8>,
    return
  }
  func.func @transform_0(%arg0: i32) -> i32 {
    %c0_i32 = arith.constant 0 : i32
    %c0_i32_0 = arith.constant 0 : i32
    return %c0_i32 : i32
  }
  func.func @transform_1(%arg0: i32) -> i32 {
    %c0_i32 = arith.constant 0 : i32
    %c0_i32_0 = arith.constant 0 : i32
    return %c0_i32 : i32
  }
  func.func @transform_2(%arg0: i32) -> (i32, i32) {
    %c0_i32 = arith.constant 0 : i32
    %c0_i32_0 = arith.constant 0 : i32
    return %arg0, %c0_i32 : i32, i32
  }
  func.func @transform_3(%arg0: i32) -> (i32, i32) {
    %c0_i32 = arith.constant 0 : i32
    %c0_i32_0 = arith.constant 0 : i32
    return %arg0, %c0_i32 : i32, i32
  }
}

</mosaic_0001>

<llo_original>
// kernel: qsend_forward.2
$region0: #{qsend_forward.2}
  #allocation0 [shape = 'u32[]', space=smem, size = 0x4, offset = 0x4, fixed_abs, tag = 'smem constant byte address 0x4 - core index']
  #allocation1 [shape = 'u32[72,128]{1,0:T(1,128)}', space=vmem, size = 0x9000, scoped, tag = 'internal scratch']
  %s0 = inlined_call_operand.vmem [shape: f32[8,256], index: 0, kind: input, shape index: {}]
  %s1 = inlined_call_operand.vmem [shape: f32[8,256], index: 1, kind: output, shape index: {0}]
  %s2 = inlined_call_operand.vmem [shape: f32[8,256], index: 2, kind: output, shape index: {1}]
  %3 = xla_tuple %s1, %s2
  %s4 = sld [smem:[#allocation0]]
  $region26: #{qsend_forward.2} parent=0
    _
  %s6 = ssub.s32 1, %s4
  %s7 = scalar_select 0, %s6, %s4
  // Predicated region
  $region2: #{qsend_forward.2} parent=0 // pred_check
    _
  $region3: #{qsend_forward.2} parent=0 // pred_check_branch
    %9 = sbr.rel (0) target = $region5
  $region4: #{qsend_forward.2} parent=0 // pred_region
    %s10 = sadd.s32 0, 0
    %p11 = scmp.lt.s32.totalorder %s10, 0
    %s12 = scalar_select %p11, %s10, 0
    %s13 = smul.addr %s12, 2
    %s14 = smul.addr %s13, 8
    %s15 = scalar_lea.vmem %s0, %s14
    %s16 = sadd.s32 0, 0
  $region5: #{qsend_forward.2} parent=0 // pred_fallthru
    _
  %s17 = sadd.s32 0, 0
  %p18 = scmp.lt.s32.totalorder %s17, 0
  %s19 = scalar_select %p18, %s17, 0
  %s20 = smul.addr %s19, 2
  %s21 = smul.addr %s20, 8
  %s22 = scalar_lea.vmem %s0, %s21
  %s23 = sadd.s32 0, 0
  %p24 = scmp.lt.s32.totalorder %s23, 0
  %s25 = scalar_select %p24, %s23, 0
  %s26 = smul.addr %s25, 2
  %s27 = smul.addr %s26, 8
  %s28 = scalar_lea.vmem %s0, %s27
  %s29 = sadd.s32 0, 0
  %p30 = scmp.eq.s32.totalorder 0, 0
  // Predicated region
  $region6: #{qsend_forward.2} parent=0 // pred_check
    %p31 = pneg %p30
  $region7: #{qsend_forward.2} parent=0 // pred_check_branch
    %33 = sbr.rel (%p31) target = $region9
  $region8: #{qsend_forward.2} parent=0 // pred_region
    %34 = vst [vmem:[%s1] sm:$0xff] inf
    %35 = vst [vmem:[%s1 + $0x8] sm:$0xff] inf
    %36 = vst [vmem:[%s2] sm:$0xff] -inf
    %37 = vst [vmem:[%s2 + $0x8] sm:$0xff] -inf
  $region9: #{qsend_forward.2} parent=0 // pred_fallthru
    _
  %v38 = vld [vmem:[%s28] sm:$0xff]
  %v39 = vld [vmem:[%s28 + $0x8] sm:$0xff]
  %v40 = vld [vmem:[%s1] sm:$0xff]
  %v41 = vld [vmem:[%s1 + $0x8] sm:$0xff]
  %v42 = vmin.f32 %v40, %v38
  %v43 = vmin.f32 %v41, %v39
  %44 = vst [vmem:[%s1] sm:$0xff] %v42
  %45 = vst [vmem:[%s1 + $0x8] sm:$0xff] %v43
  %v46 = vld [vmem:[%s2] sm:$0xff]
  %v47 = vld [vmem:[%s2 + $0x8] sm:$0xff]
  %v48 = vmax.f32 %v46, %v38
  %v49 = vmax.f32 %v47, %v39
  %50 = vst [vmem:[%s2] sm:$0xff] %v48
  %51 = vst [vmem:[%s2 + $0x8] sm:$0xff] %v49
  // Predicated region
  $region10: #{qsend_forward.2} parent=0 // pred_check
    _
  $region11: #{qsend_forward.2} parent=0 // pred_check_branch
    %53 = sbr.rel (0) target = $region13
  $region12: #{qsend_forward.2} parent=0 // pred_region
    _
  $region13: #{qsend_forward.2} parent=0 // pred_fallthru
    _
  // Predicated region
  $region14: #{qsend_forward.2} parent=0 // pred_check
    _
  $region15: #{qsend_forward.2} parent=0 // pred_check_branch
    %55 = sbr.rel (0) target = $region17
  $region16: #{qsend_forward.2} parent=0 // pred_region
    _
  $region17: #{qsend_forward.2} parent=0 // pred_fallthru
    _
  // Predicated region
  $region18: #{qsend_forward.2} parent=0 // pred_check
    _
  $region19: #{qsend_forward.2} parent=0 // pred_check_branch
    %57 = sbr.rel (0) target = $region21
  $region20: #{qsend_forward.2} parent=0 // pred_region
    _
  $region21: #{qsend_forward.2} parent=0 // pred_fallthru
    _
  // Predicated region
  $region22: #{qsend_forward.2} parent=0 // pred_check
    _
  $region23: #{qsend_forward.2} parent=0 // pred_check_branch
    %59 = sbr.rel (0) target = $region25
  $region24: #{qsend_forward.2} parent=0 // pred_region
    _
  $region25: #{qsend_forward.2} parent=0 // pred_fallthru
    _

// kernel: qsend_forward.3
$region0: #{qsend_forward.3}
  #allocation0 [shape = 'u32[]', space=smem, size = 0x4, offset = 0x4, fixed_abs, tag = 'smem constant byte address 0x4 - core index']
  #allocation1 [shape = 'u32[72,128]{1,0:T(1,128)}', space=vmem, size = 0x9000, scoped, tag = 'internal scratch']
  #allocation2 [shape = 'f32[1]{0:T(128)S(6)}', space=smem, size = 0x200, scoped, tag = 'scoped memory for qsend_forward.3']
  #allocation3 [shape = 'f32[1]{0:T(128)S(6)}', space=smem, size = 0x200, scoped, tag = 'scoped memory for qsend_forward.3']
  %s0 = inlined_call_operand.<no memory space> [shape: f32[1], index: 0, kind: input, shape index: {}]
  %s1 = inlined_call_operand.<no memory space> [shape: f32[1], index: 1, kind: input, shape index: {}]
  %s2 = inlined_call_operand.vmem [shape: f32[8,256], index: 2, kind: input, shape index: {}]
  %s3 = inlined_call_operand.vmem [shape: s8[8,256], index: 3, kind: output, shape index: {}]
  %s4 = sld [smem:[#allocation0]]
  $region22: #{qsend_forward.3} parent=0
    _
  %s6 = ssub.s32 1, %s4
  %s7 = scalar_select 0, %s6, %s4
  %8 = sst [smem:[#allocation2]] %s0
  %9 = sst [smem:[#allocation3]] %s1
  // Predicated region
  $region2: #{qsend_forward.3} parent=0 // pred_check
    _
  $region3: #{qsend_forward.3} parent=0 // pred_check_branch
    %11 = sbr.rel (0) target = $region5
  $region4: #{qsend_forward.3} parent=0 // pred_region
    _
  $region5: #{qsend_forward.3} parent=0 // pred_fallthru
    _
  // Predicated region
  $region6: #{qsend_forward.3} parent=0 // pred_check
    _
  $region7: #{qsend_forward.3} parent=0 // pred_check_branch
    %13 = sbr.rel (0) target = $region9
  $region8: #{qsend_forward.3} parent=0 // pred_region
    _
  $region9: #{qsend_forward.3} parent=0 // pred_fallthru
    _
  // Predicated region
  $region10: #{qsend_forward.3} parent=0 // pred_check
    _
  $region11: #{qsend_forward.3} parent=0 // pred_check_branch
    %15 = sbr.rel (0) target = $region13
  $region12: #{qsend_forward.3} parent=0 // pred_region
    _
  $region13: #{qsend_forward.3} parent=0 // pred_fallthru
    _
  %s16 = sld [smem:[#allocation2]]
  %s17 = sld [smem:[#allocation3]]
  %v18 = vld [vmem:[%s2] sm:$0xff]
  %v19 = vld [vmem:[%s2 + $0x8] sm:$0xff]
  %v20 = vstv %s16
  %v21 = vsub.f32 %v18, %v20
  %v22 = vsub.f32 %v19, %v20
  %v23 = vstv %s17
  %v24 = vmul.f32 %v21, %v23
  %v25 = vmul.f32 %v22, %v23
  %v26 = vround.ne.pseudo %v24
  %v27 = vround.ne.pseudo %v25
  %v28 = vsub.f32 %v26, 128.0
  %v29 = vsub.f32 %v27, 128.0
  %v30 = vmax.f32 %v28, -128.0
  %v31 = vmax.f32 %v29, -128.0
  %v32 = vmin.f32 %v30, 127.0
  %v33 = vmin.f32 %v31, 127.0
  %v34 = vmax.f32 %v32, -128.0
  %v35 = vmax.f32 %v33, -128.0
  %v36 = vmin.f32 %v34, 127.0
  %v37 = vmin.f32 %v35, 127.0
  %v38 = vcvt.f32.s32.to.zero.pseudo %v36
  %v39 = vcvt.f32.s32.to.zero.pseudo %v37
  %v40 = vpack.c.b16 %v39, %v38
  %v41 = vpack.c.b8 %v40, %v40
  %42 = vst [vmem:[%s3] sm:$0xf] %v41
  // Predicated region
  $region14: #{qsend_forward.3} parent=0 // pred_check
    _
  $region15: #{qsend_forward.3} parent=0 // pred_check_branch
    %44 = sbr.rel (0) target = $region17
  $region16: #{qsend_forward.3} parent=0 // pred_region
    _
  $region17: #{qsend_forward.3} parent=0 // pred_fallthru
    _
  // Predicated region
  $region18: #{qsend_forward.3} parent=0 // pred_check
    _
  $region19: #{qsend_forward.3} parent=0 // pred_check_branch
    %46 = sbr.rel (0) target = $region21
  $region20: #{qsend_forward.3} parent=0 // pred_region
    _
  $region21: #{qsend_forward.3} parent=0 // pred_fallthru
    _

</llo_original>
